<compile_context>
chip_gen: v5e
topology: v5e:2x2
jax: 0.10.0
libtpu: 0.0.40
codegen_flags: <defaults>
</compile_context>

<pallas_src>
import functools

import jax
import jax.numpy as jnp
from jax import lax
from jax.experimental import pallas as pl
from jax.experimental.pallas import tpu as pltpu


def _round_up(x, n):
    return (x + n - 1) // n * n


def _pad2(a, rows, cols):
    pr, pc = rows - a.shape[0], cols - a.shape[1]
    if pr == 0 and pc == 0:
        return a
    return jnp.pad(a, ((0, pr), (0, pc)))


def _token_memory_kernel(*refs, scale, mxu_dtype, has_bias):
    if has_bias:
        (x_ref, state_ref, mem_ref, bias_ref,
         new_state_ref, read_ref,
         q_scr, m_scr, l_scr, acc_scr) = refs
    else:
        (x_ref, state_ref, mem_ref,
         new_state_ref, read_ref,
         q_scr, m_scr, l_scr, acc_scr) = refs
        bias_ref = None

    j = pl.program_id(1)

    @pl.when(j == 0)
    def _():
        # Hoisted query: computed once per batch block, not once per memory
        # tile.  1/sqrt(D) folded into the small (tb, D) operand; single cast
        # to the MXU dtype here.
        q = (x_ref[...].astype(jnp.float32)
             + state_ref[...].astype(jnp.float32)) * scale
        q_scr[...] = q.astype(q_scr.dtype)
        m_scr[...] = jnp.full_like(m_scr, -jnp.inf)
        l_scr[...] = jnp.zeros_like(l_scr)
        acc_scr[...] = jnp.zeros_like(acc_scr)

    mem = mem_ref[...]                                      # (tm, dp) mxu_dtype

    # scores = query @ mem^T : contract the lane (D) axis of both operands
    # directly — no transpose in front of the MXU.  bf16 x bf16 -> f32 acc.
    scores = lax.dot_general(
        q_scr[...], mem,
        dimension_numbers=(((1,), (1,)), ((), ())),
        preferred_element_type=jnp.float32)                 # (tb, tm) f32

    if has_bias:
        # Additive padding mask tile (zeros except -inf on padded memory rows
        # of the last tile): one broadcast VPU add, no iota/compare/select.
        scores = scores + bias_ref[...]

    # Online (flash-style) softmax update; statistics kept in f32.
    m_prev = m_scr[...]
    m_new = jnp.maximum(m_prev, jnp.max(scores, axis=-1, keepdims=True))
    alpha = jnp.exp(m_prev - m_new)
    p = jnp.exp(scores - m_new)                             # (tb, tm) f32
    l_scr[...] = alpha * l_scr[...] + jnp.sum(p, axis=-1, keepdims=True)
    acc_scr[...] = alpha * acc_scr[...] + jnp.dot(
        p.astype(mxu_dtype), mem, preferred_element_type=jnp.float32)
    m_scr[...] = m_new

    @pl.when(j == pl.num_programs(1) - 1)
    def _():
        # Exact divide (runs once per batch block -> cost is negligible).
        read = acc_scr[...] / l_scr[...]
        read_ref[...] = read.astype(read_ref.dtype)
        new_state_ref[...] = (
            state_ref[...].astype(jnp.float32) + read).astype(new_state_ref.dtype)


def token_memory_forward(x, state, memories, *, block_b=None, block_m=None,
                         mxu_dtype=jnp.bfloat16):
    """One forward step of the TokenMemoryMachine.

    x:        (batch, token_dim) input tokens
    state:    (batch, token_dim) running state
    memories: (max_memories, token_dim) memory bank
    returns:  (new_state, read), both (batch, token_dim)
    """
    b, d = x.shape
    m, d2 = memories.shape
    assert d == d2 and state.shape == (b, d) and m >= 1

    out_dtype = x.dtype
    mem_bytes = jnp.dtype(mxu_dtype).itemsize
    io_bytes = jnp.dtype(out_dtype).itemsize

    # Lane/sublane-dense padded shapes (vreg = 8 x 128) -> unmasked stores.
    dp = _round_up(d, 128)

    if block_b is None:
        block_b = min(_round_up(b, 8), 256)     # review: raise batch-block cap
    else:
        block_b = _round_up(block_b, 8)
    bp = _round_up(b, block_b)

    if block_m is None:
        block_m = min(_round_up(m, 128), 2048)  # review: larger memory tiles
    else:
        block_m = _round_up(block_m, 128)

    # VMEM budget: target <= ~44 MiB so the same defaults fit v7x (64 MiB
    # physical) as well as v5e/v6e; shrink the streamed memory tile if needed.
    def _vmem_bytes(bm):
        mem_stream = 2 * bm * dp * mem_bytes               # double-buffered tiles
        bias = 2 * 8 * bm * 4                              # (1, bm) mask tile
        io = 2 * 4 * block_b * dp * max(io_bytes, 4)       # x/state/new_state/read
        scratch = block_b * dp * (4 + mem_bytes) + 2 * block_b * 128 * 4
        temps = 3 * block_b * bm * 4                       # scores / p temporaries
        return mem_stream + bias + io + scratch + temps

    budget = 44 * 1024 * 1024
    while block_m > 128 and _vmem_bytes(block_m) > budget:
        block_m = _round_up(block_m // 2, 128)

    mp = _round_up(m, block_m)

    x_p = _pad2(x, bp, dp)
    s_p = _pad2(state, bp, dp)
    mem_p = _pad2(memories.astype(mxu_dtype), mp, dp)      # bf16-streamed bank

    has_bias = (mp != m)
    scale = 1.0 / float(d) ** 0.5
    grid = (bp // block_b, mp // block_m)

    in_specs = [
        pl.BlockSpec((block_b, dp), lambda i, j: (i, 0)),    # x
        pl.BlockSpec((block_b, dp), lambda i, j: (i, 0)),    # state
        pl.BlockSpec((block_m, dp), lambda i, j: (j, 0)),    # memories (streamed)
    ]
    inputs = [x_p, s_p, mem_p]
    if has_bias:
        bias = jnp.where(jnp.arange(mp) < m, 0.0, -jnp.inf)
        bias = bias.reshape(1, mp).astype(jnp.float32)
        in_specs.append(pl.BlockSpec((1, block_m), lambda i, j: (0, j)))
        inputs.append(bias)

    kernel = functools.partial(
        _token_memory_kernel, scale=scale, mxu_dtype=mxu_dtype, has_bias=has_bias)

    # Alias new_state onto the padded state buffer only when a fresh padded
    # copy was actually made (otherwise we'd alias the caller's array).
    aliases = {}
    if (s_p is not state) and (s_p.dtype == out_dtype):
        aliases = {1: 0}

    new_state_p, read_p = pl.pallas_call(
        kernel,
        out_shape=(jax.ShapeDtypeStruct((bp, dp), out_dtype),
                   jax.ShapeDtypeStruct((bp, dp), out_dtype)),
        grid_spec=pltpu.PrefetchScalarGridSpec(
            num_scalar_prefetch=0,
            grid=grid,
            in_specs=in_specs,
            out_specs=[
                pl.BlockSpec((block_b, dp), lambda i, j: (i, 0)),   # new_state
                pl.BlockSpec((block_b, dp), lambda i, j: (i, 0)),   # read
            ],
            scratch_shapes=[
                pltpu.VMEM((block_b, dp), mxu_dtype),     # hoisted query
                pltpu.VMEM((block_b, 1), jnp.float32),    # running max
                pltpu.VMEM((block_b, 1), jnp.float32),    # running denom
                pltpu.VMEM((block_b, dp), jnp.float32),   # accumulator
            ],
        ),
        input_output_aliases=aliases,
        compiler_params=pltpu.CompilerParams(
            dimension_semantics=("parallel", "arbitrary"),
            vmem_limit_bytes=64 * 1024 * 1024,
        ),
    )(*inputs)

    if (bp, dp) != (b, d):
        new_state_p = new_state_p[:b, :d]
        read_p = read_p[:b, :d]
    return new_state_p, read_p


def _reference(x, state, memories):
    d = x.shape[-1]
    query = (x + state) / jnp.sqrt(jnp.float32(d))
    scores = query @ memories.T
    attn = jax.nn.softmax(scores, axis=-1)
    read = attn @ memories
    return state + read, read


if __name__ == "__main__":
    key = jax.random.PRNGKey(0)
    k1, k2, k3, k4, k5 = jax.random.split(key, 5)

    # ---- Test 1: module-implied shapes; state = zeros then recurrent step.
    batch_size, token_dim, max_memories = 2, 32, 8
    x1 = jax.random.normal(k1, (batch_size, token_dim), dtype=jnp.float32)
    x2 = jax.random.normal(k2, (batch_size, token_dim), dtype=jnp.float32)
    memories = jax.random.normal(k3, (max_memories, token_dim), dtype=jnp.float32)
    state0 = jnp.zeros((batch_size, token_dim), dtype=jnp.float32)   # self.state

    ref_s1, ref_r1 = _reference(x1, state0, memories)
    ref_s2, ref_r2 = _reference(x2, ref_s1, memories)

    # Default (bf16-streamed) path.
    s1, r1 = token_memory_forward(x1, state0, memories)
    s2, r2 = token_memory_forward(x2, s1, memories)          # nonzero state path
    jax.block_until_ready((s1, r1, s2, r2))
    assert jnp.allclose(s1, ref_s1, atol=5e-2, rtol=5e-2)
    assert jnp.allclose(r1, ref_r1, atol=5e-2, rtol=5e-2)
    assert jnp.allclose(s2, ref_s2, atol=5e-2, rtol=5e-2)
    assert jnp.allclose(r2, ref_r2, atol=5e-2, rtol=5e-2)

    # Exact (f32 MXU) path, tight tolerance.
    s1f, r1f = token_memory_forward(x1, state0, memories, mxu_dtype=jnp.float32)
    jax.block_until_ready((s1f, r1f))
    assert jnp.allclose(s1f, ref_s1, atol=1e-3, rtol=1e-3)
    assert jnp.allclose(r1f, ref_r1, atol=1e-3, rtol=1e-3)

    # ---- Test 2: multi-tile streaming (online softmax) + last-tile masking.
    b2, d2v, m2 = 4, 48, 300
    xb = jax.random.normal(k4, (b2, d2v), dtype=jnp.float32)
    stb = 0.1 * jax.random.normal(k5, (b2, d2v), dtype=jnp.float32)
    memb = jax.random.normal(jax.random.PRNGKey(7), (m2, d2v), dtype=jnp.float32)

    ref_sb, ref_rb = _reference(xb, stb, memb)
    sb, rb = token_memory_forward(xb, stb, memb, block_m=128)   # grid = (1, 3)
    jax.block_until_ready((sb, rb))
    assert jnp.allclose(sb, ref_sb, atol=5e-2, rtol=5e-2)
    assert jnp.allclose(rb, ref_rb, atol=5e-2, rtol=5e-2)

    # ---- Test 3: tile-aligned memory bank (no-mask fast path).
    b3, d3, m3 = 8, 128, 256
    xc = jax.random.normal(jax.random.PRNGKey(11), (b3, d3), dtype=jnp.float32)
    stc = 0.1 * jax.random.normal(jax.random.PRNGKey(12), (b3, d3), dtype=jnp.float32)
    memc = jax.random.normal(jax.random.PRNGKey(13), (m3, d3), dtype=jnp.float32)
    ref_sc, ref_rc = _reference(xc, stc, memc)
    sc, rc = token_memory_forward(xc, stc, memc)
    jax.block_until_ready((sc, rc))
    assert jnp.allclose(sc, ref_sc, atol=5e-2, rtol=5e-2)
    assert jnp.allclose(rc, ref_rc, atol=5e-2, rtol=5e-2)

    print("KERNEL_OK")
</pallas_src>

<mosaic_0001>
module attributes {stable_mosaic.version = 11 : i64} {
  func.func @_token_memory_kernel(%arg0: i32, %arg1: i32, %arg2: memref<8x128xf32, #tpu.memory_space<vmem>>, %arg3: memref<8x128xf32, #tpu.memory_space<vmem>>, %arg4: memref<128x128xbf16, #tpu.memory_space<vmem>>, %arg5: memref<1x128xf32, #tpu.memory_space<vmem>>, %arg6: memref<8x128xf32, #tpu.memory_space<vmem>>, %arg7: memref<8x128xf32, #tpu.memory_space<vmem>>, %arg8: memref<8x128xbf16, #tpu.memory_space<vmem>>, %arg9: memref<8x1xf32, #tpu.memory_space<vmem>>, %arg10: memref<8x1xf32, #tpu.memory_space<vmem>>, %arg11: memref<8x128xf32, #tpu.memory_space<vmem>>) attributes {dimension_semantics = [#tpu.dimension_semantics<parallel>, #tpu.dimension_semantics<arbitrary>], iteration_bounds = array<i64: 1, 1>, scalar_prefetch = 0 : i64, scratch_operands = 4 : i64, tpu.core_type = #tpu.core_type<tc>, window_params = [{transform_indices = @transform_0, window_bounds = array<i64: 8, 128>}, {transform_indices = @transform_1, window_bounds = array<i64: 8, 128>}, {transform_indices = @transform_2, window_bounds = array<i64: 128, 128>}, {transform_indices = @transform_3, window_bounds = array<i64: 1, 128>}, {transform_indices = @transform_4, window_bounds = array<i64: 8, 128>}, {transform_indices = @transform_5, window_bounds = array<i64: 8, 128>}]} {
    %c0_i32 = arith.constant 0 : i32
    %0 = arith.cmpi eq, %arg1, %c0_i32 : i32
    %1 = arith.extui %0 : i1 to i32
    %c0_i32_0 = arith.constant 0 : i32
    %2 = arith.cmpi ne, %1, %c0_i32_0 : i32
    scf.if %2 {
      %c0_23 = arith.constant 0 : index
      %c0_24 = arith.constant 0 : index
      %35 = vector.load %arg2[%c0_23, %c0_24] : memref<8x128xf32, #tpu.memory_space<vmem>>, vector<8x128xf32>
      %c0_25 = arith.constant 0 : index
      %c0_26 = arith.constant 0 : index
      %36 = vector.load %arg3[%c0_25, %c0_26] : memref<8x128xf32, #tpu.memory_space<vmem>>, vector<8x128xf32>
      %37 = arith.addf %35, %36 : vector<8x128xf32>
      %cst_27 = arith.constant 0.176776692 : f32
      %38 = vector.broadcast %cst_27 : f32 to vector<8x128xf32>
      %39 = arith.mulf %37, %38 : vector<8x128xf32>
      %40 = arith.truncf %39 : vector<8x128xf32> to vector<8x128xbf16>
      %c0_28 = arith.constant 0 : index
      %c0_29 = arith.constant 0 : index
      %41 = vector.load %arg8[%c0_28, %c0_29] : memref<8x128xbf16, #tpu.memory_space<vmem>>, vector<8x128xbf16>
      tpu.vector_store %arg8[%c0_28, %c0_29], %40 {strides = array<i32>} : memref<8x128xbf16, #tpu.memory_space<vmem>>, vector<8x128xbf16>,
      %cst_30 = arith.constant 0xFF800000 : f32
      %42 = vector.broadcast %cst_30 : f32 to vector<8x1xf32>
      %c0_31 = arith.constant 0 : index
      %c0_32 = arith.constant 0 : index
      %43 = vector.load %arg9[%c0_31, %c0_32] : memref<8x1xf32, #tpu.memory_space<vmem>>, vector<8x1xf32>
      tpu.vector_store %arg9[%c0_31, %c0_32], %42 {strides = array<i32>} : memref<8x1xf32, #tpu.memory_space<vmem>>, vector<8x1xf32>,
      %cst_33 = arith.constant 0.000000e+00 : f32
      %44 = vector.broadcast %cst_33 : f32 to vector<8x1xf32>
      %c0_34 = arith.constant 0 : index
      %c0_35 = arith.constant 0 : index
      %45 = vector.load %arg10[%c0_34, %c0_35] : memref<8x1xf32, #tpu.memory_space<vmem>>, vector<8x1xf32>
      tpu.vector_store %arg10[%c0_34, %c0_35], %44 {strides = array<i32>} : memref<8x1xf32, #tpu.memory_space<vmem>>, vector<8x1xf32>,
      %cst_36 = arith.constant 0.000000e+00 : f32
      %46 = vector.broadcast %cst_36 : f32 to vector<8x128xf32>
      %c0_37 = arith.constant 0 : index
      %c0_38 = arith.constant 0 : index
      %47 = vector.load %arg11[%c0_37, %c0_38] : memref<8x128xf32, #tpu.memory_space<vmem>>, vector<8x128xf32>
      tpu.vector_store %arg11[%c0_37, %c0_38], %46 {strides = array<i32>} : memref<8x128xf32, #tpu.memory_space<vmem>>, vector<8x128xf32>,
    } else {
    }
    %c0 = arith.constant 0 : index
    %c0_1 = arith.constant 0 : index
    %3 = vector.load %arg4[%c0, %c0_1] : memref<128x128xbf16, #tpu.memory_space<vmem>>, vector<128x128xbf16>
    %c0_2 = arith.constant 0 : index
    %c0_3 = arith.constant 0 : index
    %4 = vector.load %arg8[%c0_2, %c0_3] : memref<8x128xbf16, #tpu.memory_space<vmem>>, vector<8x128xbf16>
    %cst = arith.constant dense<0.000000e+00> : vector<8x128xf32>
    %5 = tpu.matmul %4, %3, %cst {dimension_numbers = #tpu.dot_dimension_numbers<[1], [1], [0], [0], [0, 0, 1, 0], [], []>} : vector<8x128xbf16>, vector<128x128xbf16>, vector<8x128xf32> -> vector<8x128xf32>
    %c0_4 = arith.constant 0 : index
    %c0_5 = arith.constant 0 : index
    %6 = vector.load %arg5[%c0_4, %c0_5] : memref<1x128xf32, #tpu.memory_space<vmem>>, vector<1x128xf32>
    %7 = vector.broadcast %6 : vector<1x128xf32> to vector<8x128xf32>
    %8 = arith.addf %5, %7 : vector<8x128xf32>
    %c0_6 = arith.constant 0 : index
    %c0_7 = arith.constant 0 : index
    %9 = vector.load %arg9[%c0_6, %c0_7] : memref<8x1xf32, #tpu.memory_space<vmem>>, vector<8x1xf32>
    %cst_8 = arith.constant dense<0xFF800000> : vector<8xf32>
    %10 = vector.multi_reduction <maximumf>, %8, %cst_8 [1] : vector<8x128xf32> to vector<8xf32>
    %11 = vector.shape_cast %10 : vector<8xf32> to vector<8x1xf32>
    %12 = arith.maximumf %9, %11 : vector<8x1xf32>
    %13 = arith.subf %9, %12 : vector<8x1xf32>
    %14 = math.exp %13 : vector<8x1xf32>
    %15 = vector.broadcast %12 : vector<8x1xf32> to vector<8x128xf32>
    %16 = arith.subf %8, %15 : vector<8x128xf32>
    %17 = math.exp %16 : vector<8x128xf32>
    %c0_9 = arith.constant 0 : index
    %c0_10 = arith.constant 0 : index
    %18 = vector.load %arg10[%c0_9, %c0_10] : memref<8x1xf32, #tpu.memory_space<vmem>>, vector<8x1xf32>
    %19 = arith.mulf %14, %18 : vector<8x1xf32>
    %cst_11 = arith.constant dense<0.000000e+00> : vector<8xf32>
    %20 = vector.multi_reduction <add>, %17, %cst_11 [1] : vector<8x128xf32> to vector<8xf32>
    %21 = vector.shape_cast %20 : vector<8xf32> to vector<8x1xf32>
    %22 = arith.addf %19, %21 : vector<8x1xf32>
    %c0_12 = arith.constant 0 : index
    %c0_13 = arith.constant 0 : index
    %23 = vector.load %arg10[%c0_12, %c0_13] : memref<8x1xf32, #tpu.memory_space<vmem>>, vector<8x1xf32>
    tpu.vector_store %arg10[%c0_12, %c0_13], %22 {strides = array<i32>} : memref<8x1xf32, #tpu.memory_space<vmem>>, vector<8x1xf32>,
    %c0_14 = arith.constant 0 : index
    %c0_15 = arith.constant 0 : index
    %24 = vector.load %arg11[%c0_14, %c0_15] : memref<8x128xf32, #tpu.memory_space<vmem>>, vector<8x128xf32>
    %25 = vector.broadcast %14 : vector<8x1xf32> to vector<8x128xf32>
    %26 = arith.mulf %25, %24 : vector<8x128xf32>
    %27 = arith.truncf %17 : vector<8x128xf32> to vector<8x128xbf16>
    %cst_16 = arith.constant dense<0.000000e+00> : vector<8x128xf32>
    %28 = tpu.matmul %27, %3, %cst_16 {dimension_numbers = #tpu.dot_dimension_numbers<[1], [0], [0], [1], [0, 0, 1, 1], [], []>} : vector<8x128xbf16>, vector<128x128xbf16>, vector<8x128xf32> -> vector<8x128xf32>
    %29 = arith.addf %26, %28 : vector<8x128xf32>
    %c0_17 = arith.constant 0 : index
    %c0_18 = arith.constant 0 : index
    %30 = vector.load %arg11[%c0_17, %c0_18] : memref<8x128xf32, #tpu.memory_space<vmem>>, vector<8x128xf32>
    tpu.vector_store %arg11[%c0_17, %c0_18], %29 {strides = array<i32>} : memref<8x128xf32, #tpu.memory_space<vmem>>, vector<8x128xf32>,
    %c0_19 = arith.constant 0 : index
    %c0_20 = arith.constant 0 : index
    %31 = vector.load %arg9[%c0_19, %c0_20] : memref<8x1xf32, #tpu.memory_space<vmem>>, vector<8x1xf32>
    tpu.vector_store %arg9[%c0_19, %c0_20], %12 {strides = array<i32>} : memref<8x1xf32, #tpu.memory_space<vmem>>, vector<8x1xf32>,
    %c0_i32_21 = arith.constant 0 : i32
    %32 = arith.cmpi eq, %arg1, %c0_i32_21 : i32
    %33 = arith.extui %32 : i1 to i32
    %c0_i32_22 = arith.constant 0 : i32
    %34 = arith.cmpi ne, %33, %c0_i32_22 : i32
    scf.if %34 {
      %c0_23 = arith.constant 0 : index
      %c0_24 = arith.constant 0 : index
      %35 = vector.load %arg11[%c0_23, %c0_24] : memref<8x128xf32, #tpu.memory_space<vmem>>, vector<8x128xf32>
      %c0_25 = arith.constant 0 : index
      %c0_26 = arith.constant 0 : index
      %36 = vector.load %arg10[%c0_25, %c0_26] : memref<8x1xf32, #tpu.memory_space<vmem>>, vector<8x1xf32>
      %37 = vector.broadcast %36 : vector<8x1xf32> to vector<8x128xf32>
      %38 = arith.divf %35, %37 : vector<8x128xf32>
      %c0_27 = arith.constant 0 : index
      %c0_28 = arith.constant 0 : index
      %39 = vector.load %arg7[%c0_27, %c0_28] : memref<8x128xf32, #tpu.memory_space<vmem>>, vector<8x128xf32>
      tpu.vector_store %arg7[%c0_27, %c0_28], %38 {strides = array<i32>} : memref<8x128xf32, #tpu.memory_space<vmem>>, vector<8x128xf32>,
      %c0_29 = arith.constant 0 : index
      %c0_30 = arith.constant 0 : index
      %40 = vector.load %arg3[%c0_29, %c0_30] : memref<8x128xf32, #tpu.memory_space<vmem>>, vector<8x128xf32>
      %41 = arith.addf %40, %38 : vector<8x128xf32>
      %c0_31 = arith.constant 0 : index
      %c0_32 = arith.constant 0 : index
      %42 = vector.load %arg6[%c0_31, %c0_32] : memref<8x128xf32, #tpu.memory_space<vmem>>, vector<8x128xf32>
      tpu.vector_store %arg6[%c0_31, %c0_32], %41 {strides = array<i32>} : memref<8x128xf32, #tpu.memory_space<vmem>>, vector<8x128xf32>,
    } else {
    }
    return
  }
  func.func @transform_0(%arg0: i32, %arg1: i32) -> (i32, i32) {
    %c0_i32 = arith.constant 0 : i32
    %c0_i32_0 = arith.constant 0 : i32
    return %arg0, %c0_i32 : i32, i32
  }
  func.func @transform_1(%arg0: i32, %arg1: i32) -> (i32, i32) {
    %c0_i32 = arith.constant 0 : i32
    %c0_i32_0 = arith.constant 0 : i32
    return %arg0, %c0_i32 : i32, i32
  }
  func.func @transform_2(%arg0: i32, %arg1: i32) -> (i32, i32) {
    %c0_i32 = arith.constant 0 : i32
    %c0_i32_0 = arith.constant 0 : i32
    return %arg1, %c0_i32 : i32, i32
  }
  func.func @transform_3(%arg0: i32, %arg1: i32) -> (i32, i32) {
    %c0_i32 = arith.constant 0 : i32
    %c0_i32_0 = arith.constant 0 : i32
    return %c0_i32, %arg1 : i32, i32
  }
  func.func @transform_4(%arg0: i32, %arg1: i32) -> (i32, i32) {
    %c0_i32 = arith.constant 0 : i32
    %c0_i32_0 = arith.constant 0 : i32
    return %arg0, %c0_i32 : i32, i32
  }
  func.func @transform_5(%arg0: i32, %arg1: i32) -> (i32, i32) {
    %c0_i32 = arith.constant 0 : i32
    %c0_i32_0 = arith.constant 0 : i32
    return %arg0, %c0_i32 : i32, i32
  }
}

</mosaic_0001>

<llo_original>
// kernel: tpu_custom_call.1
$region0: #{tpu_custom_call.1}
  #allocation0 [shape = 'u32[]', space=smem, size = 0x4, offset = 0x4, fixed_abs, tag = 'smem constant byte address 0x4 - core index']
  #allocation1 [shape = 'u32[72,128]{1,0:T(1,128)}', space=vmem, size = 0x9000, scoped, tag = 'internal scratch']
  #allocation2 [shape = 'bf16[8,128]{1,0:T(8,128)(2,1)}', space=vmem, size = 0x800, scoped, tag = 'scratch operand']
  #allocation3 [shape = 'f32[8,1]{1,0:T(8,128)}', space=vmem, size = 0x1000, scoped, tag = 'scratch operand']
  #allocation4 [shape = 'f32[8,1]{1,0:T(8,128)}', space=vmem, size = 0x1000, scoped, tag = 'scratch operand']
  #allocation5 [shape = 'f32[8,128]{1,0:T(8,128)}', space=vmem, size = 0x1000, scoped, tag = 'scratch operand']
  %s0 = inlined_call_operand.vmem [shape: f32[8,128], index: 0, kind: input, shape index: {}]
  %s1 = inlined_call_operand.hbm [shape: f32[8,128], index: 1, kind: input, shape index: {}, may-alias: {1,4}]
  %s2 = inlined_call_operand.hbm [shape: bf16[128,128], index: 2, kind: input, shape index: {}]
  %s3 = inlined_call_operand.vmem [shape: f32[1,128], index: 3, kind: input, shape index: {}]
  %s4 = inlined_call_operand.hbm [shape: f32[8,128], index: 4, kind: output, shape index: {0}, may-alias: {1,4}]
  %s5 = inlined_call_operand.hbm [shape: f32[8,128], index: 5, kind: output, shape index: {1}]
  %6 = xla_tuple %s4, %s5
  %s7 = sld [smem:[#allocation0]]
  $region50: #{tpu_custom_call.1} parent=0
    _
  %s9 = ssub.s32 1, %s7
  %s10 = scalar_select 0, %s9, %s7
  $region1: #{tpu_custom_call.1} parent=0
    #allocation6 [shape = 'u8[4096]{0}', space=vmem, size = 0x1000, scoped, tag = 'input window, operand 1, single buffered']
    #allocation7 [shape = 's32[1]{0}', space=sflag, size = 0x4, scoped, tag = 'scoped memory for tpu_custom_call.1']
    #allocation8 [shape = 's32[1]{0}', space=sflag, size = 0x4, scoped, tag = 'scoped memory for tpu_custom_call.1']
    #allocation9 [shape = 'u8[32768]{0}', space=vmem, size = 0x8000, scoped, tag = 'input window, operand 2, single buffered']
    #allocation10 [shape = 's32[1]{0}', space=sflag, size = 0x4, scoped, tag = 'scoped memory for tpu_custom_call.1']
    #allocation11 [shape = 'u8[4096]{0}', space=vmem, size = 0x1000, scoped, tag = 'output window, operand 0, single buffered']
    #allocation12 [shape = 'u8[4096]{0}', space=vmem, size = 0x1000, scoped, tag = 'output window, operand 1, single buffered']
    #allocation13 [shape = 's32[1]{0}', space=sflag, size = 0x4, scoped, tag = 'scoped memory for tpu_custom_call.1']
    %11 = vsyncpa [#allocation7], 0
    %12 = vsyncpa [#allocation10], 0
    %13 = vsyncpa [#allocation8], 0
    %14 = vsyncpa [#allocation13], 0
    // Predicated region
    $region2: #{tpu_custom_call.1} parent=1 // pred_check
      _
    $region3: #{tpu_custom_call.1} parent=1 // pred_check_branch
      %16 = sbr.rel (0) target = $region5
    $region4: #{tpu_custom_call.1} parent=1 // pred_region
      _
    $region5: #{tpu_custom_call.1} parent=1 // pred_fallthru
      _
    // Predicated region
    $region6: #{tpu_custom_call.1} parent=1 // pred_check
      _
    $region7: #{tpu_custom_call.1} parent=1 // pred_check_branch
      %18 = sbr.rel (0) target = $region9
    $region8: #{tpu_custom_call.1} parent=1 // pred_region
      %20 = vsyncadd [#allocation7], 0
      %s22 = sshll.u32 %s1, 4
      %s23 = int_to_ptr.hbm [resolvable:$true] %s22
      %s24 = sshll.u32 [#allocation6], 4
      %s25 = int_to_ptr.vmem [resolvable:$true] %s24
      %27 = dma.hbm_to_vmem [thread:$0]  %s23, 128, %s25, [#allocation7]
    $region9: #{tpu_custom_call.1} parent=1 // pred_fallthru
      _
    // Predicated region
    $region10: #{tpu_custom_call.1} parent=1 // pred_check
      _
    $region11: #{tpu_custom_call.1} parent=1 // pred_check_branch
      %29 = sbr.rel (0) target = $region13
    $region12: #{tpu_custom_call.1} parent=1 // pred_region
      %31 = vsyncadd [#allocation10], 0
      %s32 = sshll.u32 %s2, 4
      %s33 = int_to_ptr.hbm [resolvable:$true] %s32
      %s34 = sshll.u32 [#allocation9], 4
      %s35 = int_to_ptr.vmem [resolvable:$true] %s34
      %40 = dma.hbm_to_vmem [thread:$0]  %s33, 1024, %s35, [#allocation10], 64, 64, 4
    $region13: #{tpu_custom_call.1} parent=1 // pred_fallthru
      _
    // Predicated region
    $region14: #{tpu_custom_call.1} parent=1 // pred_check
      _
    $region15: #{tpu_custom_call.1} parent=1 // pred_check_branch
      %42 = sbr.rel (0) target = $region17
    $region16: #{tpu_custom_call.1} parent=1 // pred_region
      _
    $region17: #{tpu_custom_call.1} parent=1 // pred_fallthru
      _
    // Predicated region
    $region18: #{tpu_custom_call.1} parent=1 // pred_check
      _
    $region19: #{tpu_custom_call.1} parent=1 // pred_check_branch
      %44 = sbr.rel (0) target = $region21
    $region20: #{tpu_custom_call.1} parent=1 // pred_region
      %46 = dma.done [#allocation7], 128
    $region21: #{tpu_custom_call.1} parent=1 // pred_fallthru
      _
    // Predicated region
    $region22: #{tpu_custom_call.1} parent=1 // pred_check
      _
    $region23: #{tpu_custom_call.1} parent=1 // pred_check_branch
      %48 = sbr.rel (0) target = $region25
    $region24: #{tpu_custom_call.1} parent=1 // pred_region
      %50 = dma.done [#allocation10], 1024
    $region25: #{tpu_custom_call.1} parent=1 // pred_fallthru
      _
    %p51 = scmp.eq.s32.totalorder 0, 0
    // Predicated region
    $region26: #{tpu_custom_call.1} parent=1 // pred_check
      %p52 = pneg %p51
    $region27: #{tpu_custom_call.1} parent=1 // pred_check_branch
      %54 = sbr.rel (%p52) target = $region29
    $region28: #{tpu_custom_call.1} parent=1 // pred_region
      %v55 = vld [vmem:[%s0] sm:$0xff]
      %v56 = vld [vmem:[#allocation6] sm:$0xff]
      %v57 = vadd.f32 %v55, %v56
      %v58 = vmul.f32 %v57, 0.17677669
      %v59 = vpack.c.bf16 %v58, %v58
      %60 = vst [vmem:[#allocation2] sm:$0xf] %v59
      %vm61 = vcmask 7168
      %62 = vst.msk [vmem:[#allocation3] sm:$0xff] %vm61, -inf
      %63 = vst.msk [vmem:[#allocation4] sm:$0xff] %vm61, 0.0
      %64 = vst [vmem:[#allocation5] sm:$0xff] 0.0
    $region29: #{tpu_custom_call.1} parent=1 // pred_fallthru
      _
    %v65 = vld [vmem:[#allocation9] sm:$0xf]
    %v66 = vld [vmem:[#allocation9 + $0x4] sm:$0xf]
    %v67 = vld [vmem:[#allocation9 + $0x8] sm:$0xf]
    %v68 = vld [vmem:[#allocation9 + $0xc] sm:$0xf]
    %v69 = vld [vmem:[#allocation9 + $0x10] sm:$0xf]
    %v70 = vld [vmem:[#allocation9 + $0x14] sm:$0xf]
    %v71 = vld [vmem:[#allocation9 + $0x18] sm:$0xf]
    %v72 = vld [vmem:[#allocation9 + $0x1c] sm:$0xf]
    %v73 = vld [vmem:[#allocation9 + $0x20] sm:$0xf]
    %v74 = vld [vmem:[#allocation9 + $0x24] sm:$0xf]
    %v75 = vld [vmem:[#allocation9 + $0x28] sm:$0xf]
    %v76 = vld [vmem:[#allocation9 + $0x2c] sm:$0xf]
    %v77 = vld [vmem:[#allocation9 + $0x30] sm:$0xf]
    %v78 = vld [vmem:[#allocation9 + $0x34] sm:$0xf]
    %v79 = vld [vmem:[#allocation9 + $0x38] sm:$0xf]
    %v80 = vld [vmem:[#allocation9 + $0x3c] sm:$0xf]
    %v81 = vld [vmem:[#allocation2] sm:$0xf]
    %v82 = vld [vmem:[%s3] sm:$0x1]
    %v84 = vperm.slane %v82, 0
    %v102 = vunpack.c.l.b16 %v65
    %v103 = vunpack.c.l.b16 %v66
    %v104 = vunpack.c.l.b16 %v67
    %v105 = vunpack.c.l.b16 %v68
    %v106 = vunpack.c.l.b16 %v69
    %v107 = vunpack.c.l.b16 %v70
    %v108 = vunpack.c.l.b16 %v71
    %v109 = vunpack.c.l.b16 %v72
    %v110 = vunpack.c.l.b16 %v73
    %v111 = vunpack.c.l.b16 %v74
    %v112 = vunpack.c.l.b16 %v75
    %v113 = vunpack.c.l.b16 %v76
    %v114 = vunpack.c.l.b16 %v77
    %v115 = vunpack.c.l.b16 %v78
    %v116 = vunpack.c.l.b16 %v79
    %v117 = vunpack.c.l.b16 %v80
    %v118 = vpack.c.b16 %v103, %v102
    %v119 = vpack.c.b16 %v105, %v104
    %v120 = vpack.c.b16 %v107, %v106
    %v121 = vpack.c.b16 %v109, %v108
    %v122 = vpack.c.b16 %v111, %v110
    %v123 = vpack.c.b16 %v113, %v112
    %v124 = vpack.c.b16 %v115, %v114
    %v125 = vpack.c.b16 %v117, %v116
    %134 = vmatpush.bf16.xpose.msra.mxu0 %v125
    %135 = vmatpush.bf16.xpose.msra.mxu0 %v124
    %136 = vmatpush.bf16.xpose.msra.mxu0 %v123
    %137 = vmatpush.bf16.xpose.msra.mxu0 %v122
    %138 = vmatpush.bf16.xpose.msra.mxu0 %v121
    %139 = vmatpush.bf16.xpose.msra.mxu0 %v120
    %140 = vmatpush.bf16.xpose.msra.mxu0 %v119
    %141 = vmatpush.bf16.xpose.msra.mxu0 %v118
    %142 = vmatmul.bf16.gmra.mxu0 %v81
    %v143 = vpop.f32.mrf.mxu0
    %v144 = vadd.f32 %v84, %v143
    %v145 = vpop.f32.mrf.mxu0
    %146 = vdwg.mxu0
    %v147 = vld [vmem:[#allocation3] sm:$0xff]
    %148 = vmax.xlane.f32.xlu0 %v144
    %v149 = vpop.xlane.xlu0 %148
    %v150 = vmax.f32 %v147, %v149
    %v151 = vsub.f32 %v147, %v150
    %v152 = vmul.f32 %v151, 1.442695
    %v153 = vpow.pop %v152
    %155 = vset.pattern.permute.xlu0 0
    %156 = vperm.xlu0 %155, %v150
    %v157 = vpop.permute.xlu0 %156
    %v159 = vsub.f32 %v144, %v157
    %v160 = vmul.f32 %v159, 1.442695
    %v161 = vpow.pop %v160
    %v162 = vld [vmem:[#allocation4] sm:$0xff]
    %v163 = vmul.f32 %v153, %v162
    %164 = vadd.xlane.f32.xlu0 %v161
    %v165 = vpop.xlane.xlu0 %164
    %v166 = vadd.f32 %v163, %v165
    %vm167 = vcmask 7168
    %168 = vst.msk [vmem:[#allocation4] sm:$0xff] %vm167, %v166
    %v169 = vld [vmem:[#allocation5] sm:$0xff]
    %171 = vset.pattern.permute.xlu0 0
    %172 = vperm.xlu0 %171, %v153
    %v173 = vpop.permute.xlu0 %172
    %v175 = vmul.f32 %v173, %v169
    %v176 = vpack.c.bf16 %v161, %v161
    %177 = vmatpush.bf16.msra.mxu0 %v125
    %178 = vmatpush.bf16.msra.mxu0 %v124
    %179 = vmatpush.bf16.msra.mxu0 %v123
    %180 = vmatpush.bf16.msra.mxu0 %v122
    %181 = vmatpush.bf16.msra.mxu0 %v121
    %182 = vmatpush.bf16.msra.mxu0 %v120
    %183 = vmatpush.bf16.msra.mxu0 %v119
    %184 = vmatpush.bf16.msra.mxu0 %v118
    %185 = vmatmul.bf16.gmra.mxu0 %v176
    %v186 = vpop.f32.mrf.mxu0
    %v187 = vadd.f32 0.0, %v186
    %v188 = vpop.f32.mrf.mxu0
    %189 = vdwg.mxu0
    %v190 = vadd.f32 %v175, %v187
    %191 = vst [vmem:[#allocation5] sm:$0xff] %v190
    %192 = vst.msk [vmem:[#allocation3] sm:$0xff] %vm167, %v150
    // Predicated region
    $region30: #{tpu_custom_call.1} parent=1 // pred_check
      %p193 = pneg %p51
    $region31: #{tpu_custom_call.1} parent=1 // pred_check_branch
      %195 = sbr.rel (%p193) target = $region33
    $region32: #{tpu_custom_call.1} parent=1 // pred_region
      %v196 = vld [vmem:[#allocation5] sm:$0xff]
      %v197 = vld [vmem:[#allocation4] sm:$0xff]
      %199 = vset.pattern.permute.xlu0 0
      %200 = vperm.xlu0 %199, %v197
      %v201 = vpop.permute.xlu0 %200
      %v203 = vrcp.pop %v201
      %v204 = vmul.f32 %v201, %v203
      %v205 = vsub.f32 1.0, %v204
      %v206 = vmul.f32 %v203, %v205
      %v207 = vadd.f32 %v203, %v206
      %vm208 = vweird.f32 %v201
      %vm209 = vweird.f32 %v203
      %vm210 = vmor %vm208, %vm209
      %v211 = vsel %vm210, %v203, %v207
      %v212 = vand.u32 2147483647, %v201
      %vm213 = vcmp.eq.f32.partialorder %v212, 8.507059e+37
      %v214 = vand.u32 %v201, 2147483648
      %v215 = vor.u32 1.1754944e-38, %v214
      %v216 = vsel %vm213, %v215, %v211
      %v217 = vmul.f32 %v196, %v216
      %218 = vst [vmem:[#allocation12] sm:$0xff] %v217
      %v219 = vld [vmem:[#allocation6] sm:$0xff]
      %v220 = vadd.f32 %v219, %v217
      %221 = vst [vmem:[#allocation11] sm:$0xff] %v220
    $region33: #{tpu_custom_call.1} parent=1 // pred_fallthru
      _
    // Predicated region
    $region34: #{tpu_custom_call.1} parent=1 // pred_check
      _
    $region35: #{tpu_custom_call.1} parent=1 // pred_check_branch
      %223 = sbr.rel (0) target = $region37
    $region36: #{tpu_custom_call.1} parent=1 // pred_region
      %225 = vsyncadd [#allocation8], 0
      %s227 = sshll.u32 [#allocation11], 4
      %s228 = int_to_ptr.vmem [resolvable:$true] %s227
      %s229 = sshll.u32 %s4, 4
      %s230 = int_to_ptr.hbm [resolvable:$true] %s229
      %232 = dma.vmem_to_hbm [thread:$0]  %s228, 128, %s230, [#allocation8]
    $region37: #{tpu_custom_call.1} parent=1 // pred_fallthru
      _
    // Predicated region
    $region38: #{tpu_custom_call.1} parent=1 // pred_check
      _
    $region39: #{tpu_custom_call.1} parent=1 // pred_check_branch
      %234 = sbr.rel (0) target = $region41
    $region40: #{tpu_custom_call.1} parent=1 // pred_region
      %236 = vsyncadd [#allocation13], 0
      %s238 = sshll.u32 [#allocation12], 4
      %s239 = int_to_ptr.vmem [resolvable:$true] %s238
      %s240 = sshll.u32 %s5, 4
      %s241 = int_to_ptr.hbm [resolvable:$true] %s240
      %243 = dma.vmem_to_hbm [thread:$0]  %s239, 128, %s241, [#allocation13]
    $region41: #{tpu_custom_call.1} parent=1 // pred_fallthru
      _
    // Predicated region
    $region42: #{tpu_custom_call.1} parent=1 // pred_check
      _
    $region43: #{tpu_custom_call.1} parent=1 // pred_check_branch
      %245 = sbr.rel (0) target = $region45
    $region44: #{tpu_custom_call.1} parent=1 // pred_region
      %247 = dma.done [#allocation8], 128
    $region45: #{tpu_custom_call.1} parent=1 // pred_fallthru
      _
    // Predicated region
    $region46: #{tpu_custom_call.1} parent=1 // pred_check
      _
    $region47: #{tpu_custom_call.1} parent=1 // pred_check_branch
      %249 = sbr.rel (0) target = $region49
    $region48: #{tpu_custom_call.1} parent=1 // pred_region
      %251 = dma.done [#allocation13], 128
    $region49: #{tpu_custom_call.1} parent=1 // pred_fallthru
      _
    %252 = vsyncpa [#allocation7], 1
    %253 = vsyncpa [#allocation10], 1
    %254 = vsyncpa [#allocation8], 1
    %255 = vsyncpa [#allocation13], 1

</llo_original>
